<compile_context>
chip_gen: v5e
topology: v5e:2x2
jax: 0.10.0
libtpu: 0.0.40
codegen_flags: <defaults>
</compile_context>

<pallas_src>
import functools

import jax
import jax.numpy as jnp
from jax import lax
from jax.experimental import pallas as pl
from jax.experimental.pallas import tpu as pltpu

_MIB = 1024 * 1024
_STACK_COPY_LIMIT = 4 * _MIB   # above this per-slab size, skip the HBM stack copy


def _vmem_limit(nbytes):
    # Generous scoped-VMEM cap (it is a ceiling, not an allocation); floor at
    # 16 MiB so v5e's small default never bites, cap well under any chip's VMEM.
    return int(min(max(nbytes, 16 * _MIB), 100 * _MIB))


# ----------------------------------------------------------------------------
# Kernels
# ----------------------------------------------------------------------------
def _hard_triplet_kernel(feat_ref, o_ref, *, n, margin):
    """Hardest-mining triplet loss for one (M, C) slab; grid axis = slab index.

    Mining is done on squared distances, so sqrt shrinks from M^2 to 2M ops and
    no elementwise zero-guard over the (M, M) matrix is needed.
    """
    x_in = feat_ref[0]                                    # (M, C)
    xf = x_in.astype(jnp.float32)
    # bf16 operands keep the gram on the native MXU path on v6e/v7x (f32 would
    # be multi-pass emulation).  All post-matmul elementwise math stays f32.
    xb = x_in.astype(jnp.bfloat16)
    m = x_in.shape[0]

    # Gram via contraction-on-last-dims: no explicit transpose/relayout of x.
    gram = lax.dot_general(xb, xb, (((1,), (1,)), ((), ())),
                           preferred_element_type=jnp.float32)   # (M, M)
    sq = jnp.sum(xf * xf, axis=1, keepdims=True)                 # (M, 1)
    d2 = jnp.maximum(sq - 2.0 * gram + sq.T, 0.0)                # squared dists

    # Labels of flattened rows are (row % n).  Masks are built once per slab
    # (single grid step per slab), not per reduction step.
    ri = lax.broadcasted_iota(jnp.int32, (m, m), 0)
    ci = lax.broadcasted_iota(jnp.int32, (m, m), 1)
    same = (ri % n) == (ci % n)
    not_self = ri != ci

    # Hardest positive: explicit diagonal exclusion is required because the
    # bf16 gram makes diag(d2) only approximately zero.
    hp2 = jnp.max(jnp.where(same & not_self, d2, 0.0), axis=1, keepdims=True)
    # Hardest negative: plain masked min on d2.  Only the degenerate n == 1
    # case (rows with no negative) differs from the reference formulation.
    hn2 = jnp.min(jnp.where(same, jnp.float32(1e30), d2), axis=1, keepdims=True)

    hardest_pos = jnp.sqrt(hp2)                                  # 2*M sqrts total
    hardest_neg = jnp.sqrt(hn2)
    tl = jnp.maximum(hardest_pos - hardest_neg + margin, 0.0)    # (M, 1)
    o_ref[...] = jnp.full(o_ref.shape, jnp.mean(tl), jnp.float32)


def _label_smoothing_ce_kernel(x_ref, o_ref, *, n, smoothing):
    """Label-smoothing cross entropy for one (M, C) slab; targets = row % n."""
    x = x_ref[0].astype(jnp.float32)                     # (M, C)
    m, c = x.shape

    mx = jnp.max(x, axis=1, keepdims=True)
    lse = jnp.log(jnp.sum(jnp.exp(x - mx), axis=1, keepdims=True)) + mx
    logp = x - lse                                       # log_softmax

    ri = lax.broadcasted_iota(jnp.int32, (m, c), 0)
    ci = lax.broadcasted_iota(jnp.int32, (m, c), 1)
    onehot = ci == (ri % n)                              # gather via one-hot select
    nll = -jnp.sum(jnp.where(onehot, logp, 0.0), axis=1, keepdims=True)
    smooth = -jnp.mean(logp, axis=1, keepdims=True)

    per = (1.0 - smoothing) * nll + smoothing * smooth
    o_ref[...] = jnp.full(o_ref.shape, jnp.mean(per), jnp.float32)


def _mse_kernel(p_ref, l_ref, o_ref, acc_ref, *, nbpc, block_rows, valid_rows,
                need_mask):
    """Tiled sum of squared differences; per-core SMEM accumulator, per-core
    partial output (summed in the wrapper)."""
    i = pl.program_id(1)

    @pl.when(i == 0)
    def _():
        acc_ref[0, 0] = jnp.float32(0.0)

    d = p_ref[...].astype(jnp.float32) - l_ref[...].astype(jnp.float32)
    if need_mask:
        # Zero contributions from rows past the end of the data (ragged last
        # block / clamped duplicate block) instead of padding in HBM.
        c = pl.program_id(0)
        row0 = (c * nbpc + i) * block_rows
        rid = lax.broadcasted_iota(jnp.int32, (d.shape[0], 1), 0) + row0
        d = jnp.where(rid < valid_rows, d, 0.0)
    acc_ref[0, 0] += jnp.sum(d * d)

    @pl.when(i == pl.num_programs(1) - 1)
    def _():
        o_ref[...] = jnp.full(o_ref.shape, acc_ref[0, 0], jnp.float32)


# ----------------------------------------------------------------------------
# Pallas wrappers
# ----------------------------------------------------------------------------
def _triplet_batched(stack, *, n, margin):
    """stack: (F, M, C) -> sum over F of per-slab hardest triplet loss."""
    f, m, c = stack.shape
    isz = stack.dtype.itemsize
    # TODO(synk): for very large M (>~1-2K) on v7x, row-tile the (M, M) distance
    # matrix (keep the (M, C) slab resident, mine per row-tile) instead of
    # materializing it in one shot.
    vmem = _vmem_limit(2 * m * c * isz + 12 * m * m * 4 + 4 * m * c * 4 + 2 * _MIB)
    out = pl.pallas_call(
        functools.partial(_hard_triplet_kernel, n=int(n), margin=float(margin)),
        out_shape=jax.ShapeDtypeStruct((f, 8, 128), jnp.float32),
        grid=(f,),
        in_specs=[pl.BlockSpec((1, m, c), lambda i: (i, 0, 0))],
        out_specs=pl.BlockSpec((1, 8, 128), lambda i: (i, 0, 0)),
        compiler_params=pltpu.CompilerParams(
            dimension_semantics=("parallel",), vmem_limit_bytes=vmem),
    )(stack)
    return jnp.sum(out[:, 0, 0])


def _ce_batched(stack, *, n, smoothing):
    """stack: (K, M, C) -> sum over K of per-slab label-smoothing CE."""
    k, m, c = stack.shape
    isz = stack.dtype.itemsize
    vmem = _vmem_limit(2 * m * c * isz + 8 * m * c * 4 + 2 * _MIB)
    out = pl.pallas_call(
        functools.partial(_label_smoothing_ce_kernel, n=int(n),
                          smoothing=float(smoothing)),
        out_shape=jax.ShapeDtypeStruct((k, 8, 128), jnp.float32),
        grid=(k,),
        in_specs=[pl.BlockSpec((1, m, c), lambda i: (i, 0, 0))],
        out_specs=pl.BlockSpec((1, 8, 128), lambda i: (i, 0, 0)),
        compiler_params=pltpu.CompilerParams(
            dimension_semantics=("parallel",), vmem_limit_bytes=vmem),
    )(stack)
    return jnp.sum(out[:, 0, 0])


def mse_loss(pred, label):
    """Mean squared error over all elements; lane-dense tiled, 2-TC split."""
    total = int(pred.size)

    # Pick a lane width that divides the element count so no jnp.pad (full HBM
    # read+write) is needed; ragged blocks are masked in-kernel instead.
    lane = 128
    for cand in (512, 256, 128):
        if total % cand == 0 and total // cand >= 8:
            lane = cand
            break
    rows = max(-(-total // lane), 8)
    padded = rows * lane

    p = pred.reshape(-1)
    l = label.reshape(-1)
    if padded != total:
        # Rare fallback (count not a multiple of 128, or tiny input): minimal
        # zero-pad so the 2D reshape is legal; zeros contribute exactly 0.
        p = jnp.pad(p, (0, padded - total))
        l = jnp.pad(l, (0, padded - total))
    p = p.reshape(rows, lane)
    l = l.reshape(rows, lane)

    # ~4 MiB (f32) per input block so the ~0.35us/step overhead is amortized.
    block_rows = max(8, min(-(-rows // 8) * 8, (2048 * 512) // lane))
    n_blocks = -(-rows // block_rows)

    # Split the HBM stream across both TensorCores on v7x; no-op on 1-TC chips.
    n_split = 2 if n_blocks >= 2 else 1
    nbpc = -(-n_blocks // n_split)
    need_mask = (n_split * nbpc * block_rows) != rows

    if n_split * nbpc == n_blocks:
        def imap(c, i):
            return (c * nbpc + i, 0)
    else:
        # Odd split: clamp the block index; the duplicate block is fully masked
        # out in-kernel (its row offset is past valid_rows).
        def imap(c, i):
            return (jnp.minimum(c * nbpc + i, n_blocks - 1), 0)

    vmem = _vmem_limit(
        2 * block_rows * lane * (pred.dtype.itemsize + label.dtype.itemsize)
        + 2 * block_rows * lane * 4 + 2 * _MIB)

    out = pl.pallas_call(
        functools.partial(_mse_kernel, nbpc=nbpc, block_rows=block_rows,
                          valid_rows=rows, need_mask=need_mask),
        out_shape=jax.ShapeDtypeStruct((n_split, 8, 128), jnp.float32),
        grid=(n_split, nbpc),
        in_specs=[pl.BlockSpec((block_rows, lane), imap),
                  pl.BlockSpec((block_rows, lane), imap)],
        out_specs=pl.BlockSpec((1, 8, 128), lambda c, i: (c, 0, 0)),
        scratch_shapes=[pltpu.SMEM((1, 1), jnp.float32)],
        compiler_params=pltpu.CompilerParams(
            dimension_semantics=("parallel", "arbitrary"),
            vmem_limit_bytes=vmem),
    )(p, l)
    # TODO(synk): pairwise per-block partials would tighten f32 accumulation
    # error for >~1e8-element inputs; the 2-core split already halves it.
    return jnp.sum(out[:, 0, 0]) * (1.0 / float(total))


def _grouped_calls(tensors, call_fn):
    """Group same-shape (B, N, C) slabs.  Small groups are stacked into a single
    pallas_call (one launch, megacore-parallel over slabs); large slabs are
    called per-slab so each is read from HBM exactly once (no stack copy)."""
    groups = {}
    for t in tensors:
        groups.setdefault(t.shape, []).append(t)
    total = jnp.float32(0.0)
    for (b, n, c), group in groups.items():
        slab_bytes = b * n * c * group[0].dtype.itemsize
        if len(group) == 1 or slab_bytes > _STACK_COPY_LIMIT:
            for g in group:
                total = total + call_fn(g.reshape(1, b * n, c), n)
        else:
            stack = jnp.stack([g.reshape(b * n, c) for g in group], axis=0)
            total = total + call_fn(stack, n)
    return total


def _sum_triplet_losses(feats, margin):
    if not feats:
        return jnp.float32(0.0)
    return _grouped_calls(
        feats, lambda stack, n: _triplet_batched(stack, n=n, margin=margin))


def _sum_ce_losses(clips, smoothing):
    if not clips:
        return jnp.float32(0.0)
    return _grouped_calls(
        clips, lambda stack, n: _ce_batched(stack, n=n, smoothing=smoothing))


@functools.partial(jax.jit, static_argnames=("margin", "smoothing"))
def _total_loss(pred, label, feats, clips, alpha, alpha_ce, *, margin, smoothing):
    m_loss = 10.0 * mse_loss(pred, label)
    t_loss = _sum_triplet_losses(feats, margin)
    ce_loss = _sum_ce_losses(clips, smoothing)
    return m_loss + alpha * t_loss + alpha_ce * ce_loss


class LossFunPallas:
    """JAX/Pallas port of models/loss.py::LossFun (forward only)."""

    def __init__(self, alpha, margin):
        self.alpha = float(alpha)
        self.margin = float(margin)
        self.alpha_ce = 0.01
        self.smoothing = 0.1

    def __call__(self, pred, label, feat, feat2, feat3, feat4, feat5, feat6,
                 clip, clip2):
        if feat is not None:
            feats = tuple(f for f in (feat, feat2, feat3, feat4, feat5, feat6)
                          if f is not None)
            alpha = self.alpha
        else:
            feats = ()
            alpha = 0.0
        if clip is not None:
            clips = tuple(c for c in (clip, clip2) if c is not None)
            alpha_ce = self.alpha_ce
        else:
            clips = ()
            alpha_ce = 0.0
        return _total_loss(pred, label, feats, clips, alpha, alpha_ce,
                           margin=self.margin, smoothing=self.smoothing)


# ----------------------------------------------------------------------------
# Pure-JAX reference (sanity check only)
# ----------------------------------------------------------------------------
def _ref_triplet(feat, margin):
    b, n, c = feat.shape
    x = feat.reshape(b * n, c).astype(jnp.float32)
    la = jnp.tile(jnp.arange(n), b)
    gram = x @ x.T
    sq = jnp.sum(x * x, axis=1, keepdims=True)
    d2 = jnp.maximum(sq - 2.0 * gram + sq.T, 0.0)
    zm = (d2 == 0.0).astype(jnp.float32)
    dist = jnp.sqrt(d2 + zm * 1e-16) * (1.0 - zm)
    same = la[:, None] == la[None, :]
    eye = jnp.eye(b * n, dtype=bool)
    pos = jnp.logical_and(same, ~eye).astype(jnp.float32)
    neg = (~same).astype(jnp.float32)
    hp = jnp.max(dist * pos, axis=1)
    md = jnp.max(dist, axis=1, keepdims=True)
    hn = jnp.min(dist + md * (1.0 - neg), axis=1)
    return jnp.mean(jnp.maximum(hp - hn + margin, 0.0))


def _ref_ce(clip, smoothing):
    b, n, c = clip.shape
    x = clip.reshape(b * n, c).astype(jnp.float32)
    la = jnp.tile(jnp.arange(n), b)
    logp = jax.nn.log_softmax(x, axis=-1)
    nll = -jnp.take_along_axis(logp, la[:, None], axis=1)[:, 0]
    smooth = -jnp.mean(logp, axis=-1)
    return jnp.mean((1.0 - smoothing) * nll + smoothing * smooth)


def _ref_total(pred, label, feats, clips, alpha, margin, alpha_ce, smoothing):
    t = sum(_ref_triplet(f, margin) for f in feats if f is not None)
    ce = sum(_ref_ce(cl, smoothing) for cl in clips if cl is not None)
    m = 10.0 * jnp.mean((pred - label) ** 2)
    return m + alpha * t + alpha_ce * ce


# ----------------------------------------------------------------------------
if __name__ == "__main__":
    key = jax.random.PRNGKey(0)
    ks = jax.random.split(key, 6)

    B, N, C = 2, 8, 32
    pred = jax.random.normal(ks[0], (2, 4, 16, 16), jnp.float32)
    label = jax.random.normal(ks[1], (2, 4, 16, 16), jnp.float32)
    feat = jax.random.normal(ks[2], (B, N, C), jnp.float32)
    feat2 = jax.random.normal(ks[3], (B, N, C), jnp.float32)
    clip = jax.random.normal(ks[4], (B, N, N), jnp.float32)   # logits over N classes
    clip2 = jax.random.normal(ks[5], (B, N, N), jnp.float32)

    loss_fn = LossFunPallas(alpha=1.0, margin=0.3)
    out = loss_fn(pred, label, feat, feat2, None, None, None, None, clip, clip2)
    out = jax.block_until_ready(out)

    ref = _ref_total(pred, label, (feat, feat2), (clip, clip2),
                     alpha=1.0, margin=0.3, alpha_ce=0.01, smoothing=0.1)
    # Slightly relaxed tolerance: the triplet gram intentionally uses bf16
    # operands (MXU-native on v6e/v7x); everything else is f32.
    assert jnp.allclose(out, ref, rtol=5e-3, atol=5e-3), (out, ref)

    print("KERNEL_OK")
</pallas_src>

<mosaic_0001>
module attributes {stable_mosaic.version = 11 : i64} {
  func.func @_mse_kernel(%arg0: i32, %arg1: i32, %arg2: memref<8x256xf32, #tpu.memory_space<vmem>>, %arg3: memref<8x256xf32, #tpu.memory_space<vmem>>, %arg4: memref<1x8x128xf32, #tpu.memory_space<vmem>>, %arg5: memref<1x1xf32, #tpu.memory_space<smem>>) attributes {dimension_semantics = [#tpu.dimension_semantics<parallel>, #tpu.dimension_semantics<arbitrary>], iteration_bounds = array<i64: 1, 1>, scalar_prefetch = 0 : i64, scratch_operands = 1 : i64, tpu.core_type = #tpu.core_type<tc>, window_params = [{transform_indices = @transform_0, window_bounds = array<i64: 8, 256>}, {transform_indices = @transform_1, window_bounds = array<i64: 8, 256>}, {transform_indices = @transform_2, window_bounds = array<i64: 1, 8, 128>}]} {
    %c0_i32 = arith.constant 0 : i32
    %0 = arith.cmpi eq, %arg1, %c0_i32 : i32
    %1 = arith.extui %0 : i1 to i32
    %c0_i32_0 = arith.constant 0 : i32
    %2 = arith.cmpi ne, %1, %c0_i32_0 : i32
    scf.if %2 {
      %cst_10 = arith.constant 0.000000e+00 : f32
      %c0_11 = arith.constant 0 : index
      %c0_12 = arith.constant 0 : index
      %17 = memref.load %arg5[%c0_11, %c0_12] : memref<1x1xf32, #tpu.memory_space<smem>>
      memref.store %cst_10, %arg5[%c0_11, %c0_12] : memref<1x1xf32, #tpu.memory_space<smem>>
    } else {
    }
    %c0 = arith.constant 0 : index
    %c0_1 = arith.constant 0 : index
    %3 = vector.load %arg2[%c0, %c0_1] : memref<8x256xf32, #tpu.memory_space<vmem>>, vector<8x256xf32>
    %c0_2 = arith.constant 0 : index
    %c0_3 = arith.constant 0 : index
    %4 = vector.load %arg3[%c0_2, %c0_3] : memref<8x256xf32, #tpu.memory_space<vmem>>, vector<8x256xf32>
    %5 = arith.subf %3, %4 : vector<8x256xf32>
    %c0_4 = arith.constant 0 : index
    %c0_5 = arith.constant 0 : index
    %6 = memref.load %arg5[%c0_4, %c0_5] : memref<1x1xf32, #tpu.memory_space<smem>>
    %7 = arith.mulf %5, %5 : vector<8x256xf32>
    %8 = vector.shape_cast %7 : vector<8x256xf32> to vector<1x8x256xf32>
    %cst = arith.constant dense<0.000000e+00> : vector<1xf32>
    %9 = vector.multi_reduction <add>, %8, %cst [1, 2] : vector<1x8x256xf32> to vector<1xf32>
    %10 = vector.shape_cast %9 : vector<1xf32> to vector<1x1x1xf32>
    %11 = vector.extract %10[0, 0, 0] : f32 from vector<1x1x1xf32>
    %12 = arith.addf %6, %11 : f32
    %c0_6 = arith.constant 0 : index
    %c0_7 = arith.constant 0 : index
    %13 = memref.load %arg5[%c0_6, %c0_7] : memref<1x1xf32, #tpu.memory_space<smem>>
    memref.store %12, %arg5[%c0_6, %c0_7] : memref<1x1xf32, #tpu.memory_space<smem>>
    %c0_i32_8 = arith.constant 0 : i32
    %14 = arith.cmpi eq, %arg1, %c0_i32_8 : i32
    %15 = arith.extui %14 : i1 to i32
    %c0_i32_9 = arith.constant 0 : i32
    %16 = arith.cmpi ne, %15, %c0_i32_9 : i32
    scf.if %16 {
      %c0_10 = arith.constant 0 : index
      %c0_11 = arith.constant 0 : index
      %17 = memref.load %arg5[%c0_10, %c0_11] : memref<1x1xf32, #tpu.memory_space<smem>>
      %18 = vector.broadcast %17 : f32 to vector<1x8x128xf32>
      %c0_12 = arith.constant 0 : index
      %c0_13 = arith.constant 0 : index
      %c0_14 = arith.constant 0 : index
      %19 = vector.load %arg4[%c0_12, %c0_13, %c0_14] : memref<1x8x128xf32, #tpu.memory_space<vmem>>, vector<1x8x128xf32>
      tpu.vector_store %arg4[%c0_12, %c0_13, %c0_14], %18 {strides = array<i32>} : memref<1x8x128xf32, #tpu.memory_space<vmem>>, vector<1x8x128xf32>,
    } else {
    }
    return
  }
  func.func @transform_0(%arg0: i32, %arg1: i32) -> (i32, i32) {
    %c1_i32 = arith.constant 1 : i32
    %0 = arith.muli %arg0, %c1_i32 : i32
    %1 = arith.addi %0, %arg1 : i32
    %c0_i32 = arith.constant 0 : i32
    %c0_i32_0 = arith.constant 0 : i32
    return %1, %c0_i32 : i32, i32
  }
  func.func @transform_1(%arg0: i32, %arg1: i32) -> (i32, i32) {
    %c1_i32 = arith.constant 1 : i32
    %0 = arith.muli %arg0, %c1_i32 : i32
    %1 = arith.addi %0, %arg1 : i32
    %c0_i32 = arith.constant 0 : i32
    %c0_i32_0 = arith.constant 0 : i32
    return %1, %c0_i32 : i32, i32
  }
  func.func @transform_2(%arg0: i32, %arg1: i32) -> (i32, i32, i32) {
    %c0_i32 = arith.constant 0 : i32
    %c0_i32_0 = arith.constant 0 : i32
    %c0_i32_1 = arith.constant 0 : i32
    return %arg0, %c0_i32, %c0_i32_0 : i32, i32, i32
  }
}

module attributes {stable_mosaic.version = 11 : i64} {
  func.func @_hard_triplet_kernel(%arg0: i32, %arg1: memref<1x16x32xf32, #tpu.memory_space<vmem>>, %arg2: memref<1x8x128xf32, #tpu.memory_space<vmem>>) attributes {dimension_semantics = [#tpu.dimension_semantics<parallel>], iteration_bounds = array<i64: 2>, scalar_prefetch = 0 : i64, scratch_operands = 0 : i64, tpu.core_type = #tpu.core_type<tc>, window_params = [{transform_indices = @transform_0, window_bounds = array<i64: 1, 16, 32>}, {transform_indices = @transform_1, window_bounds = array<i64: 1, 8, 128>}]} {
    %c0 = arith.constant 0 : index
    %c0_0 = arith.constant 0 : index
    %c0_1 = arith.constant 0 : index
    %0 = vector.load %arg1[%c0, %c0_0, %c0_1] : memref<1x16x32xf32, #tpu.memory_space<vmem>>, vector<1x16x32xf32>
    %1 = vector.shape_cast %0 : vector<1x16x32xf32> to vector<16x32xf32>
    %2 = arith.truncf %1 : vector<16x32xf32> to vector<16x32xbf16>
    %cst = arith.constant dense<0.000000e+00> : vector<16x16xf32>
    %3 = tpu.matmul %2, %2, %cst {dimension_numbers = #tpu.dot_dimension_numbers<[1], [1], [0], [0], [0, 0, 1, 0], [], []>} : vector<16x32xbf16>, vector<16x32xbf16>, vector<16x16xf32> -> vector<16x16xf32>
    %4 = arith.mulf %1, %1 : vector<16x32xf32>
    %cst_2 = arith.constant dense<0.000000e+00> : vector<16xf32>
    %5 = vector.multi_reduction <add>, %4, %cst_2 [1] : vector<16x32xf32> to vector<16xf32>
    %6 = vector.shape_cast %5 : vector<16xf32> to vector<16x1xf32>
    %cst_3 = arith.constant 2.000000e+00 : f32
    %7 = vector.broadcast %cst_3 : f32 to vector<16x16xf32>
    %8 = arith.mulf %7, %3 : vector<16x16xf32>
    %9 = vector.broadcast %6 : vector<16x1xf32> to vector<16x16xf32>
    %10 = arith.subf %9, %8 : vector<16x16xf32>
    %11 = tpu.transpose %6, [1, 0] : vector<16x1xf32> -> vector<1x16xf32>
    %12 = vector.broadcast %11 : vector<1x16xf32> to vector<16x16xf32>
    %13 = arith.addf %10, %12 : vector<16x16xf32>
    %cst_4 = arith.constant 0.000000e+00 : f32
    %14 = vector.broadcast %cst_4 : f32 to vector<16x16xf32>
    %15 = arith.maximumf %13, %14 : vector<16x16xf32>
    %16 = tpu.iota {dimensions = array<i32: 0>} : vector<16x16xi32>
    %17 = tpu.iota {dimensions = array<i32: 1>} : vector<16x16xi32>
    %c8_i32 = arith.constant 8 : i32
    %c0_i32 = arith.constant 0 : i32
    %18 = arith.cmpi eq, %c8_i32, %c0_i32 : i32
    %c1_i32 = arith.constant 1 : i32
    %19 = arith.select %18, %c1_i32, %c8_i32 : i32
    %20 = vector.broadcast %19 : i32 to vector<16x16xi32>
    %21 = arith.remsi %16, %20 : vector<16x16xi32>
    %c0_i32_5 = arith.constant 0 : i32
    %22 = vector.broadcast %c0_i32_5 : i32 to vector<16x16xi32>
    %23 = arith.cmpi ne, %21, %22 : vector<16x16xi32>
    %c0_i32_6 = arith.constant 0 : i32
    %24 = vector.broadcast %c0_i32_6 : i32 to vector<16x16xi32>
    %25 = arith.cmpi slt, %21, %24 : vector<16x16xi32>
    %c0_i32_7 = arith.constant 0 : i32
    %26 = arith.cmpi slt, %19, %c0_i32_7 : i32
    %27 = vector.broadcast %26 : i1 to vector<16x16xi1>
    %28 = vector.broadcast %27 : vector<16x16xi1> to vector<16x16xi1>
    %29 = arith.xori %25, %28 : vector<16x16xi1>
    %30 = arith.andi %29, %23 : vector<16x16xi1>
    %31 = vector.broadcast %19 : i32 to vector<16x16xi32>
    %32 = arith.addi %21, %31 : vector<16x16xi32>
    %33 = arith.select %30, %32, %21 : vector<16x16xi1>, vector<16x16xi32>
    %c8_i32_8 = arith.constant 8 : i32
    %c0_i32_9 = arith.constant 0 : i32
    %34 = arith.cmpi eq, %c8_i32_8, %c0_i32_9 : i32
    %c1_i32_10 = arith.constant 1 : i32
    %35 = arith.select %34, %c1_i32_10, %c8_i32_8 : i32
    %36 = vector.broadcast %35 : i32 to vector<16x16xi32>
    %37 = arith.remsi %17, %36 : vector<16x16xi32>
    %c0_i32_11 = arith.constant 0 : i32
    %38 = vector.broadcast %c0_i32_11 : i32 to vector<16x16xi32>
    %39 = arith.cmpi ne, %37, %38 : vector<16x16xi32>
    %c0_i32_12 = arith.constant 0 : i32
    %40 = vector.broadcast %c0_i32_12 : i32 to vector<16x16xi32>
    %41 = arith.cmpi slt, %37, %40 : vector<16x16xi32>
    %c0_i32_13 = arith.constant 0 : i32
    %42 = arith.cmpi slt, %35, %c0_i32_13 : i32
    %43 = vector.broadcast %42 : i1 to vector<16x16xi1>
    %44 = vector.broadcast %43 : vector<16x16xi1> to vector<16x16xi1>
    %45 = arith.xori %41, %44 : vector<16x16xi1>
    %46 = arith.andi %45, %39 : vector<16x16xi1>
    %47 = vector.broadcast %35 : i32 to vector<16x16xi32>
    %48 = arith.addi %37, %47 : vector<16x16xi32>
    %49 = arith.select %46, %48, %37 : vector<16x16xi1>, vector<16x16xi32>
    %50 = arith.cmpi eq, %33, %49 : vector<16x16xi32>
    %51 = arith.cmpi ne, %16, %17 : vector<16x16xi32>
    %52 = arith.andi %50, %51 : vector<16x16xi1>
    %cst_14 = arith.constant 0.000000e+00 : f32
    %53 = vector.broadcast %cst_14 : f32 to vector<16x16xf32>
    %54 = arith.select %52, %15, %53 : vector<16x16xi1>, vector<16x16xf32>
    %cst_15 = arith.constant dense<0xFF800000> : vector<16xf32>
    %55 = vector.multi_reduction <maximumf>, %54, %cst_15 [1] : vector<16x16xf32> to vector<16xf32>
    %56 = vector.shape_cast %55 : vector<16xf32> to vector<16x1xf32>
    %cst_16 = arith.constant 1.000000e+30 : f32
    %57 = vector.broadcast %cst_16 : f32 to vector<16x16xf32>
    %58 = arith.select %50, %57, %15 : vector<16x16xi1>, vector<16x16xf32>
    %cst_17 = arith.constant dense<0x7F800000> : vector<16xf32>
    %59 = vector.multi_reduction <minimumf>, %58, %cst_17 [1] : vector<16x16xf32> to vector<16xf32>
    %60 = vector.shape_cast %59 : vector<16xf32> to vector<16x1xf32>
    %61 = math.sqrt %56 : vector<16x1xf32>
    %62 = math.sqrt %60 : vector<16x1xf32>
    %63 = arith.subf %61, %62 : vector<16x1xf32>
    %cst_18 = arith.constant 3.000000e-01 : f32
    %64 = vector.broadcast %cst_18 : f32 to vector<16x1xf32>
    %65 = arith.addf %63, %64 : vector<16x1xf32>
    %cst_19 = arith.constant 0.000000e+00 : f32
    %66 = vector.broadcast %cst_19 : f32 to vector<16x1xf32>
    %67 = arith.maximumf %65, %66 : vector<16x1xf32>
    %68 = vector.shape_cast %67 : vector<16x1xf32> to vector<1x16x1xf32>
    %cst_20 = arith.constant dense<0.000000e+00> : vector<1xf32>
    %69 = vector.multi_reduction <add>, %68, %cst_20 [1, 2] : vector<1x16x1xf32> to vector<1xf32>
    %70 = vector.shape_cast %69 : vector<1xf32> to vector<1x1x1xf32>
    %71 = vector.extract %70[0, 0, 0] : f32 from vector<1x1x1xf32>
    %cst_21 = arith.constant 1.600000e+01 : f32
    %72 = arith.divf %71, %cst_21 : f32
    %73 = vector.broadcast %72 : f32 to vector<1x8x128xf32>
    %c0_22 = arith.constant 0 : index
    %c0_23 = arith.constant 0 : index
    %c0_24 = arith.constant 0 : index
    %74 = vector.load %arg2[%c0_22, %c0_23, %c0_24] : memref<1x8x128xf32, #tpu.memory_space<vmem>>, vector<1x8x128xf32>
    tpu.vector_store %arg2[%c0_22, %c0_23, %c0_24], %73 {strides = array<i32>} : memref<1x8x128xf32, #tpu.memory_space<vmem>>, vector<1x8x128xf32>,
    return
  }
  func.func @transform_0(%arg0: i32) -> (i32, i32, i32) {
    %c0_i32 = arith.constant 0 : i32
    %c0_i32_0 = arith.constant 0 : i32
    %c0_i32_1 = arith.constant 0 : i32
    return %arg0, %c0_i32, %c0_i32_0 : i32, i32, i32
  }
  func.func @transform_1(%arg0: i32) -> (i32, i32, i32) {
    %c0_i32 = arith.constant 0 : i32
    %c0_i32_0 = arith.constant 0 : i32
    %c0_i32_1 = arith.constant 0 : i32
    return %arg0, %c0_i32, %c0_i32_0 : i32, i32, i32
  }
}

module attributes {stable_mosaic.version = 11 : i64} {
  func.func @_label_smoothing_ce_kernel(%arg0: i32, %arg1: memref<1x16x8xf32, #tpu.memory_space<vmem>>, %arg2: memref<1x8x128xf32, #tpu.memory_space<vmem>>) attributes {dimension_semantics = [#tpu.dimension_semantics<parallel>], iteration_bounds = array<i64: 2>, scalar_prefetch = 0 : i64, scratch_operands = 0 : i64, tpu.core_type = #tpu.core_type<tc>, window_params = [{transform_indices = @transform_0, window_bounds = array<i64: 1, 16, 8>}, {transform_indices = @transform_1, window_bounds = array<i64: 1, 8, 128>}]} {
    %c0 = arith.constant 0 : index
    %c0_0 = arith.constant 0 : index
    %c0_1 = arith.constant 0 : index
    %0 = vector.load %arg1[%c0, %c0_0, %c0_1] : memref<1x16x8xf32, #tpu.memory_space<vmem>>, vector<1x16x8xf32>
    %1 = vector.shape_cast %0 : vector<1x16x8xf32> to vector<16x8xf32>
    %cst = arith.constant dense<0xFF800000> : vector<16xf32>
    %2 = vector.multi_reduction <maximumf>, %1, %cst [1] : vector<16x8xf32> to vector<16xf32>
    %3 = vector.shape_cast %2 : vector<16xf32> to vector<16x1xf32>
    %4 = vector.broadcast %3 : vector<16x1xf32> to vector<16x8xf32>
    %5 = arith.subf %1, %4 : vector<16x8xf32>
    %6 = math.exp %5 : vector<16x8xf32>
    %cst_2 = arith.constant dense<0.000000e+00> : vector<16xf32>
    %7 = vector.multi_reduction <add>, %6, %cst_2 [1] : vector<16x8xf32> to vector<16xf32>
    %8 = vector.shape_cast %7 : vector<16xf32> to vector<16x1xf32>
    %9 = math.log %8 : vector<16x1xf32>
    %10 = arith.addf %9, %3 : vector<16x1xf32>
    %11 = vector.broadcast %10 : vector<16x1xf32> to vector<16x8xf32>
    %12 = arith.subf %1, %11 : vector<16x8xf32>
    %13 = tpu.iota {dimensions = array<i32: 0>} : vector<16x8xi32>
    %14 = tpu.iota {dimensions = array<i32: 1>} : vector<16x8xi32>
    %c8_i32 = arith.constant 8 : i32
    %c0_i32 = arith.constant 0 : i32
    %15 = arith.cmpi eq, %c8_i32, %c0_i32 : i32
    %c1_i32 = arith.constant 1 : i32
    %16 = arith.select %15, %c1_i32, %c8_i32 : i32
    %17 = vector.broadcast %16 : i32 to vector<16x8xi32>
    %18 = arith.remsi %13, %17 : vector<16x8xi32>
    %c0_i32_3 = arith.constant 0 : i32
    %19 = vector.broadcast %c0_i32_3 : i32 to vector<16x8xi32>
    %20 = arith.cmpi ne, %18, %19 : vector<16x8xi32>
    %c0_i32_4 = arith.constant 0 : i32
    %21 = vector.broadcast %c0_i32_4 : i32 to vector<16x8xi32>
    %22 = arith.cmpi slt, %18, %21 : vector<16x8xi32>
    %c0_i32_5 = arith.constant 0 : i32
    %23 = arith.cmpi slt, %16, %c0_i32_5 : i32
    %24 = vector.broadcast %23 : i1 to vector<16x8xi1>
    %25 = vector.broadcast %24 : vector<16x8xi1> to vector<16x8xi1>
    %26 = arith.xori %22, %25 : vector<16x8xi1>
    %27 = arith.andi %26, %20 : vector<16x8xi1>
    %28 = vector.broadcast %16 : i32 to vector<16x8xi32>
    %29 = arith.addi %18, %28 : vector<16x8xi32>
    %30 = arith.select %27, %29, %18 : vector<16x8xi1>, vector<16x8xi32>
    %31 = arith.cmpi eq, %14, %30 : vector<16x8xi32>
    %cst_6 = arith.constant 0.000000e+00 : f32
    %32 = vector.broadcast %cst_6 : f32 to vector<16x8xf32>
    %33 = arith.select %31, %12, %32 : vector<16x8xi1>, vector<16x8xf32>
    %cst_7 = arith.constant dense<0.000000e+00> : vector<16xf32>
    %34 = vector.multi_reduction <add>, %33, %cst_7 [1] : vector<16x8xf32> to vector<16xf32>
    %35 = vector.shape_cast %34 : vector<16xf32> to vector<16x1xf32>
    %cst_8 = arith.constant 0.000000e+00 : f32
    %36 = vector.broadcast %cst_8 : f32 to vector<16x1xf32>
    %37 = arith.subf %36, %35 : vector<16x1xf32>
    %cst_9 = arith.constant dense<0.000000e+00> : vector<16xf32>
    %38 = vector.multi_reduction <add>, %12, %cst_9 [1] : vector<16x8xf32> to vector<16xf32>
    %39 = vector.shape_cast %38 : vector<16xf32> to vector<16x1xf32>
    %cst_10 = arith.constant 8.000000e+00 : f32
    %40 = vector.broadcast %cst_10 : f32 to vector<16x1xf32>
    %41 = arith.divf %39, %40 : vector<16x1xf32>
    %cst_11 = arith.constant 0.000000e+00 : f32
    %42 = vector.broadcast %cst_11 : f32 to vector<16x1xf32>
    %43 = arith.subf %42, %41 : vector<16x1xf32>
    %cst_12 = arith.constant 0.899999976 : f32
    %44 = vector.broadcast %cst_12 : f32 to vector<16x1xf32>
    %45 = arith.mulf %44, %37 : vector<16x1xf32>
    %cst_13 = arith.constant 1.000000e-01 : f32
    %46 = vector.broadcast %cst_13 : f32 to vector<16x1xf32>
    %47 = arith.mulf %46, %43 : vector<16x1xf32>
    %48 = arith.addf %45, %47 : vector<16x1xf32>
    %49 = vector.shape_cast %48 : vector<16x1xf32> to vector<1x16x1xf32>
    %cst_14 = arith.constant dense<0.000000e+00> : vector<1xf32>
    %50 = vector.multi_reduction <add>, %49, %cst_14 [1, 2] : vector<1x16x1xf32> to vector<1xf32>
    %51 = vector.shape_cast %50 : vector<1xf32> to vector<1x1x1xf32>
    %52 = vector.extract %51[0, 0, 0] : f32 from vector<1x1x1xf32>
    %cst_15 = arith.constant 1.600000e+01 : f32
    %53 = arith.divf %52, %cst_15 : f32
    %54 = vector.broadcast %53 : f32 to vector<1x8x128xf32>
    %c0_16 = arith.constant 0 : index
    %c0_17 = arith.constant 0 : index
    %c0_18 = arith.constant 0 : index
    %55 = vector.load %arg2[%c0_16, %c0_17, %c0_18] : memref<1x8x128xf32, #tpu.memory_space<vmem>>, vector<1x8x128xf32>
    tpu.vector_store %arg2[%c0_16, %c0_17, %c0_18], %54 {strides = array<i32>} : memref<1x8x128xf32, #tpu.memory_space<vmem>>, vector<1x8x128xf32>,
    return
  }
  func.func @transform_0(%arg0: i32) -> (i32, i32, i32) {
    %c0_i32 = arith.constant 0 : i32
    %c0_i32_0 = arith.constant 0 : i32
    %c0_i32_1 = arith.constant 0 : i32
    return %arg0, %c0_i32, %c0_i32_0 : i32, i32, i32
  }
  func.func @transform_1(%arg0: i32) -> (i32, i32, i32) {
    %c0_i32 = arith.constant 0 : i32
    %c0_i32_0 = arith.constant 0 : i32
    %c0_i32_1 = arith.constant 0 : i32
    return %arg0, %c0_i32, %c0_i32_0 : i32, i32, i32
  }
}

</mosaic_0001>

<llo_original>
// kernel: _total_loss.3
$region0: #{_total_loss.3}
  #allocation0 [shape = 'u32[]', space=smem, size = 0x4, offset = 0x4, fixed_abs, tag = 'smem constant byte address 0x4 - core index']
  #allocation1 [shape = 'u32[72,128]{1,0:T(1,128)}', space=vmem, size = 0x9000, scoped, tag = 'internal scratch']
  #allocation2 [shape = 'f32[1,1]{1,0:T(1,128)}', space=smem, size = 0x200, scoped, tag = 'scratch operand']
  %s0 = inlined_call_operand.vmem [shape: f32[8,256], index: 0, kind: input, shape index: {}]
  %s1 = inlined_call_operand.vmem [shape: f32[8,256], index: 1, kind: input, shape index: {}]
  %s2 = inlined_call_operand.vmem [shape: f32[1,8,128], index: 2, kind: output, shape index: {}]
  %s3 = sld [smem:[#allocation0]]
  $region26: #{_total_loss.3} parent=0
    _
  %s5 = ssub.s32 1, %s3
  %s6 = scalar_select 0, %s5, %s3
  // Predicated region
  $region2: #{_total_loss.3} parent=0 // pred_check
    _
  $region3: #{_total_loss.3} parent=0 // pred_check_branch
    %8 = sbr.rel (0) target = $region5
  $region4: #{_total_loss.3} parent=0 // pred_region
    %s9 = sadd.s32 0, 0
    %p10 = scmp.lt.s32.totalorder %s9, 0
    %s11 = scalar_select %p10, %s9, 0
    %s12 = smul.addr %s11, 2
    %s13 = smul.addr %s12, 8
    %s14 = scalar_lea.vmem %s0, %s13
    %s15 = sadd.s32 0, 0
  $region5: #{_total_loss.3} parent=0 // pred_fallthru
    _
  // Predicated region
  $region6: #{_total_loss.3} parent=0 // pred_check
    _
  $region7: #{_total_loss.3} parent=0 // pred_check_branch
    %17 = sbr.rel (0) target = $region9
  $region8: #{_total_loss.3} parent=0 // pred_region
    %s18 = sadd.s32 0, 0
    %p19 = scmp.lt.s32.totalorder %s18, 0
    %s20 = scalar_select %p19, %s18, 0
    %s21 = smul.addr %s20, 2
    %s22 = smul.addr %s21, 8
    %s23 = scalar_lea.vmem %s1, %s22
    %s24 = sadd.s32 0, 0
  $region9: #{_total_loss.3} parent=0 // pred_fallthru
    _
  %s25 = sadd.s32 0, 0
  %p26 = scmp.lt.s32.totalorder %s25, 0
  %s27 = scalar_select %p26, %s25, 0
  %s28 = smul.addr %s27, 2
  %s29 = smul.addr %s28, 8
  %s30 = scalar_lea.vmem %s0, %s29
  %s31 = sadd.s32 0, 0
  %p32 = scmp.lt.s32.totalorder %s31, 0
  %s33 = scalar_select %p32, %s31, 0
  %s34 = smul.addr %s33, 2
  %s35 = smul.addr %s34, 8
  %s36 = scalar_lea.vmem %s1, %s35
  %s37 = sadd.s32 0, 0
  %p38 = scmp.lt.s32.totalorder %s37, 0
  %s39 = scalar_select %p38, %s37, 0
  %s40 = smul.addr %s39, 2
  %s41 = smul.addr %s40, 8
  %s42 = scalar_lea.vmem %s0, %s41
  %s43 = sadd.s32 0, 0
  %s44 = sadd.s32 0, 0
  %p45 = scmp.lt.s32.totalorder %s44, 0
  %s46 = scalar_select %p45, %s44, 0
  %s47 = smul.addr %s46, 2
  %s48 = smul.addr %s47, 8
  %s49 = scalar_lea.vmem %s1, %s48
  %s50 = sadd.s32 0, 0
  %p51 = scmp.eq.s32.totalorder 0, 0
  // Predicated region
  $region10: #{_total_loss.3} parent=0 // pred_check
    %p52 = pneg %p51
  $region11: #{_total_loss.3} parent=0 // pred_check_branch
    %54 = sbr.rel (%p52) target = $region13
  $region12: #{_total_loss.3} parent=0 // pred_region
    %s55 = scalar_lea.smem [#allocation2], 0
    %56 = sst [smem:[%s55]] 0.0
  $region13: #{_total_loss.3} parent=0 // pred_fallthru
    _
  %v57 = vld [vmem:[%s42] sm:$0xff]
  %v58 = vld [vmem:[%s42 + $0x8] sm:$0xff]
  %v59 = vld [vmem:[%s49] sm:$0xff]
  %v60 = vld [vmem:[%s49 + $0x8] sm:$0xff]
  %v61 = vsub.f32 %v57, %v59
  %v62 = vsub.f32 %v58, %v60
  %s63 = sld [smem:[#allocation2]]
  %v64 = vmul.f32 %v61, %v61
  %v65 = vmul.f32 %v62, %v62
  %v66 = vadd.f32 %v64, %v65
  %67 = vadd.xlane.f32.xlu0 %v66
  %v68 = vpop.xlane.xlu0 %67
  %v69 = vrot.slane %v68, 4
  %v70 = vadd.f32 %v68, %v69
  %v71 = vrot.slane %v70, 2
  %v72 = vadd.f32 %v70, %v71
  %v73 = vrot.slane %v72, 1
  %v74 = vadd.f32 %v72, %v73
  %s75 = vtos %v74
  %s76 = sadd.f32 %s63, %s75
  %s77 = scalar_lea.smem [#allocation2], 0
  %78 = sst [smem:[%s77]] %s76
  // Predicated region
  $region14: #{_total_loss.3} parent=0 // pred_check
    %p79 = pneg %p51
  $region15: #{_total_loss.3} parent=0 // pred_check_branch
    %81 = sbr.rel (%p79) target = $region17
  $region16: #{_total_loss.3} parent=0 // pred_region
    %s82 = sld [smem:[#allocation2]]
    %v83 = vstv %s82
    %84 = vst [vmem:[%s2] sm:$0xff] %v83
  $region17: #{_total_loss.3} parent=0 // pred_fallthru
    _
  // Predicated region
  $region18: #{_total_loss.3} parent=0 // pred_check
    _
  $region19: #{_total_loss.3} parent=0 // pred_check_branch
    %86 = sbr.rel (0) target = $region21
  $region20: #{_total_loss.3} parent=0 // pred_region
    _
  $region21: #{_total_loss.3} parent=0 // pred_fallthru
    _
  // Predicated region
  $region22: #{_total_loss.3} parent=0 // pred_check
    _
  $region23: #{_total_loss.3} parent=0 // pred_check_branch
    %88 = sbr.rel (0) target = $region25
  $region24: #{_total_loss.3} parent=0 // pred_region
    _
  $region25: #{_total_loss.3} parent=0 // pred_fallthru
    _

// kernel: _total_loss.4
$region0: #{_total_loss.4}
  #allocation0 [shape = 'u32[]', space=smem, size = 0x4, offset = 0x4, fixed_abs, tag = 'smem constant byte address 0x4 - core index']
  #allocation1 [shape = 'u32[72,128]{1,0:T(1,128)}', space=vmem, size = 0x9000, scoped, tag = 'internal scratch']
  %s0 = inlined_call_operand.vmem [shape: f32[2,16,32], index: 0, kind: input, shape index: {}]
  %s1 = inlined_call_operand.vmem [shape: f32[2,8,128], index: 1, kind: output, shape index: {}]
  %s2 = sld [smem:[#allocation0]]
  $region37: #{_total_loss.4} parent=0
    _
  %s4 = ssub.s32 1, %s2
  %s5 = scalar_select 0, %s4, %s2
  loop: start=0, step=1, limit=4
  $region2: #{_total_loss.4} parent=0 // loop_pre_header
    _
  $region3: #{_total_loss.4} parent=0 // loop_header
    %s7 = sphi 0, %s11
    %p8 = scmp.ge.s32.totalorder %s7, 4
    %s17 = sphi 0, %s19
    %s20 = sphi 0, %s17
    %s21 = sphi 0, %s20
    %s37 = sphi 0, %s21
    %s43 = sphi 0, %s45
    %s46 = sphi 0, %s43
    %s47 = sphi 0, %s46
    %s63 = sphi 0, %s47
  $region4: #{_total_loss.4} parent=0 // loop_header_branch
    %10 = sbr.rel (%p8) target = $region8
  $region5: #{_total_loss.4} parent=0 // loop_body
    %s12 = ssub.s32 %s7, 1
    %s13 = ssub.s32 %s7, 2
    %s14 = sadd.s32 %s7, 1
    %s15 = ssub.s32 %s7, %s14
    %p16 = scmp.eq.s32.totalorder %s15, 0
    %s18 = sadd.s32 %s17, 1
    %s19 = scalar_select %p16, %s17, %s18
    %p22 = pneg %p16
    %p23 = scmp.eq.s32.totalorder %s7, 1
    %p24 = por %p22, %p23
    %p25 = scmp.ne.s32.totalorder %s17, %s20
    %p26 = scmp.eq.s32.totalorder %s7, 0
    %p27 = por %p25, %p26
    %p28 = scmp.ne.s32.totalorder %s17, %s20
    %p29 = scmp.eq.s32.totalorder %s12, 1
    %p30 = por %p28, %p29
    %p31 = scmp.ne.s32.totalorder %s20, %s21
    %p32 = scmp.eq.s32.totalorder %s12, 0
    %p33 = por %p31, %p32
    %p34 = scmp.ne.s32.totalorder %s20, %s21
    %p35 = scmp.eq.s32.totalorder %s13, 1
    %p36 = por %p34, %p35
    %p38 = scmp.ne.s32.totalorder %s21, %s37
    %p39 = scmp.eq.s32.totalorder %s13, 0
    %p40 = por %p38, %p39
    %s41 = ssub.s32 %s7, %s14
    %p42 = scmp.eq.s32.totalorder %s41, 0
    %s44 = sadd.s32 %s43, 1
    %s45 = scalar_select %p42, %s43, %s44
    %p48 = pneg %p42
    %p49 = scmp.eq.s32.totalorder %s7, 1
    %p50 = por %p48, %p49
    %p51 = scmp.ne.s32.totalorder %s43, %s46
    %p52 = scmp.eq.s32.totalorder %s7, 0
    %p53 = por %p51, %p52
    %p54 = scmp.ne.s32.totalorder %s43, %s46
    %p55 = scmp.eq.s32.totalorder %s12, 1
    %p56 = por %p54, %p55
    %p57 = scmp.ne.s32.totalorder %s46, %s47
    %p58 = scmp.eq.s32.totalorder %s12, 0
    %p59 = por %p57, %p58
    %p60 = scmp.ne.s32.totalorder %s46, %s47
    %p61 = scmp.eq.s32.totalorder %s13, 1
    %p62 = por %p60, %p61
    %p64 = scmp.ne.s32.totalorder %s47, %s63
    %p65 = scmp.eq.s32.totalorder %s13, 0
    %p66 = por %p64, %p65
    %p67 = scmp.le.s32.totalorder 1, %s7
    %p68 = scmp.lt.s32.totalorder %s7, 3
    %p69 = pnand %p67, %p68
    %p70 = pneg %p69
    // Predicated region
    $region9: #{_total_loss.4} parent=5 // pred_check
      _
    $region10: #{_total_loss.4} parent=5 // pred_check_branch
      %72 = sbr.rel (%p69) target = $region12
    $region11: #{_total_loss.4} parent=5 // pred_region
      %s73 = ssub.s32 %s7, 1
    $region12: #{_total_loss.4} parent=5 // pred_fallthru
      _
    %p74 = scmp.lt.s32.totalorder %s7, 2
    // Predicated region
    $region13: #{_total_loss.4} parent=5 // pred_check
      %p75 = pneg %p74
    $region14: #{_total_loss.4} parent=5 // pred_check_branch
      %77 = sbr.rel (%p75) target = $region16
    $region15: #{_total_loss.4} parent=5 // pred_region
      // Predicated region
      $region17: #{_total_loss.4} parent=15 // pred_check
        %p78 = pneg %p27
      $region18: #{_total_loss.4} parent=15 // pred_check_branch
        %80 = sbr.rel (%p78) target = $region20
      $region19: #{_total_loss.4} parent=15 // pred_region
        %p81 = scmp.lt.s32.totalorder %s7, 1
        %s82 = scalar_select %p81, %s7, 1
        %s83 = smul.addr %s82, 2
        %s84 = smul.addr %s83, 8
        %s85 = scalar_lea.vmem %s0, %s84
      $region20: #{_total_loss.4} parent=15 // pred_fallthru
        _
    $region16: #{_total_loss.4} parent=5 // pred_fallthru
      _
    %p86 = scmp.le.s32.totalorder 1, %s7
    %p87 = scmp.lt.s32.totalorder %s7, 3
    %p88 = pnand %p86, %p87
    %p89 = pneg %p88
    // Predicated region
    $region21: #{_total_loss.4} parent=5 // pred_check
      _
    $region22: #{_total_loss.4} parent=5 // pred_check_branch
      %91 = sbr.rel (%p88) target = $region24
    $region23: #{_total_loss.4} parent=5 // pred_region
      %s92 = ssub.s32 %s7, 1
      %p93 = scmp.lt.s32.totalorder %s12, 1
      %s94 = scalar_select %p93, %s12, 1
      %s95 = smul.addr %s94, 2
      %s96 = smul.addr %s95, 8
      %s97 = scalar_lea.vmem %s0, %s96
      %p98 = pneg %p33
      %p99 = pneg %p30
      %p100 = pneg %p59
      %p101 = pneg %p56
      %p102 = scmp.lt.s32.totalorder %s12, 1
      %s103 = scalar_select %p102, %s12, 1
      %s104 = smul.addr %s103, 8
      %s105 = scalar_lea.vmem %s1, %s104
      %p106 = scmp.lt.s32.totalorder %s12, 1
      %s107 = scalar_select %p106, %s12, 1
      %s108 = smul.addr %s107, 2
      %s109 = smul.addr %s108, 8
      %s110 = scalar_lea.vmem %s0, %s109
      %p111 = scmp.lt.s32.totalorder %s12, 1
      %s112 = scalar_select %p111, %s12, 1
      %s113 = smul.addr %s112, 8
      %s114 = scalar_lea.vmem %s1, %s113
      %v116 = vld [vmem:[%s110] sm:$0xff]
      %v117 = vld [vmem:[%s110 + $0x8] sm:$0xff]
      %v118 = vpack.c.bf16 %v117, %v116
      %vm119 = vcmask 261120
      %v121 = vsel %vm119, %v118, 0
      %123 = vmatpush.bf16.xpose.msra.mxu0 0
      %124 = vmatpush.bf16.xpose.msra.mxu0 0
      %125 = vmatpush.bf16.xpose.msra.mxu0 0
      %126 = vmatpush.bf16.xpose.msra.mxu0 0
      %127 = vmatpush.bf16.xpose.msra.mxu0 0
      %128 = vmatpush.bf16.xpose.msra.mxu0 0
      %129 = vmatpush.bf16.xpose.msra.mxu0 0
      %130 = vmatpush.bf16.xpose.msra.mxu0 %v121
      %131 = vmatmul.bf16.gmra.mxu0 %v121
      %v132 = vpop.f32.mrf.mxu0
      %v133 = vadd.f32 0.0, %v132
      %v134 = vpop.f32.mrf.mxu0
      %v135 = vadd.f32 0.0, %v134
      %136 = vdwg.mxu0
      %v137 = vmul.f32 %v116, %v116
      %v138 = vmul.f32 %v117, %v117
      %v139 = vsel %vm119, %v137, 0.0
      %140 = vadd.xlane.f32.xlu0 %v139
      %v141 = vpop.xlane.xlu0 %140
      %v142 = vsel %vm119, %v138, 0.0
      %143 = vadd.xlane.f32.xlu0 %v142
      %v144 = vpop.xlane.xlu0 %143
      %v145 = vmul.f32 %v133, 2.0
      %v146 = vmul.f32 %v135, 2.0
      %v147 = vsub.f32 %v141, %v145
      %v148 = vsub.f32 %v144, %v146
      %149 = vxpose.xlu0.b32.start [1/16] %v141, 128
      %150 = vxpose.xlu0.b32.cont [2/16] %v144, 128
      %151 = vxpose.xlu0.b32.cont [3/16] 0.0, 128
      %152 = vxpose.xlu0.b32.cont [4/16] 0.0, 128
      %153 = vxpose.xlu0.b32.cont [5/16] 0.0, 128
      %154 = vxpose.xlu0.b32.cont [6/16] 0.0, 128
      %155 = vxpose.xlu0.b32.cont [7/16] 0.0, 128
      %156 = vxpose.xlu0.b32.cont [8/16] 0.0, 128
      %157 = vxpose.xlu0.b32.cont [9/16] 0.0, 128
      %158 = vxpose.xlu0.b32.cont [10/16] 0.0, 128
      %159 = vxpose.xlu0.b32.cont [11/16] 0.0, 128
      %160 = vxpose.xlu0.b32.cont [12/16] 0.0, 128
      %161 = vxpose.xlu0.b32.cont [13/16] 0.0, 128
      %162 = vxpose.xlu0.b32.cont [14/16] 0.0, 128
      %163 = vxpose.xlu0.b32.cont [15/16] 0.0, 128
      %164 = vxpose.xlu0.b32.end [16/16] 0.0, 128
      %v165 = vpop.trf.xlu0
      %v166 = vpop.trf.xlu0
      %v167 = vpop.trf.xlu0
      %v168 = vpop.trf.xlu0
      %v169 = vpop.trf.xlu0
      %v170 = vpop.trf.xlu0
      %v171 = vpop.trf.xlu0
      %v172 = vpop.trf.xlu0
      %v173 = vpop.trf.xlu0
      %v174 = vpop.trf.xlu0
      %v175 = vpop.trf.xlu0
      %v176 = vpop.trf.xlu0
      %v177 = vpop.trf.xlu0
      %v178 = vpop.trf.xlu0
      %v179 = vpop.trf.xlu0
      %v180 = vpop.trf.xlu0
      %v181 = vperm.slane %v165, 0
      %v182 = vadd.f32 %v147, %v181
      %v183 = vadd.f32 %v148, %v181
      %v184 = vmax.f32 %v182, 0.0
      %v185 = vmax.f32 %v183, 0.0
      %v186 = vlaneseq
      %v187 = vshrl.u32 %v186, 7
      %v188 = vadd.s32 %v187, 8
      %v189 = vlaneseq
      %v190 = vand.u32 %v189, 127
      %vm191 = vcmp.lt.s32.totalorder %v187, 0
      %v192 = vsub.s32 0, %v187
      %v193 = vsel %vm191, %v192, %v187
      %v194 = vshrl.u32 %v193, 3
      %v195 = vand.u32 %v193, 7
      %v196 = vsub.s32 0, %v195
      %v197 = vsel %vm191, %v196, %v195
      %vm198 = vcmp.lt.s32.totalorder %v188, 0
      %v199 = vsub.s32 0, %v188
      %v200 = vsel %vm198, %v199, %v188
      %v201 = vshrl.u32 %v200, 3
      %v202 = vand.u32 %v200, 7
      %v203 = vsub.s32 0, %v202
      %v204 = vsel %vm198, %v203, %v202
      %vm205 = vcmp.ne.s32.totalorder %v197, 0
      %vm206 = vcmp.ne.s32.totalorder %v204, 0
      %vm207 = vcmp.lt.s32.totalorder %v197, 0
      %vm208 = vcmp.lt.s32.totalorder %v204, 0
      %vm209 = vmand %vm207, %vm205
      %vm210 = vmand %vm208, %vm206
      %v211 = vadd.s32 %v197, 8
      %v212 = vadd.s32 %v204, 8
      %v213 = vsel %vm209, %v211, %v197
      %v214 = vsel %vm210, %v212, %v204
      %vm215 = vcmp.lt.s32.totalorder %v190, 0
      %v216 = vsub.s32 0, %v190
      %v217 = vsel %vm215, %v216, %v190
      %v218 = vshrl.u32 %v217, 3
      %v219 = vand.u32 %v217, 7
      %v220 = vsub.s32 0, %v219
      %v221 = vsel %vm215, %v220, %v219
      %vm222 = vcmp.ne.s32.totalorder %v221, 0
      %vm223 = vcmp.lt.s32.totalorder %v221, 0
      %vm224 = vmand %vm223, %vm222
      %v225 = vadd.s32 %v221, 8
      %v226 = vsel %vm224, %v225, %v221
      %vm227 = vcmp.eq.s32.totalorder %v213, %v226
      %vm228 = vcmp.eq.s32.totalorder %v214, %v226
      %vm229 = vcmp.ne.s32.totalorder %v187, %v190
      %vm230 = vcmp.ne.s32.totalorder %v188, %v190
      %vm231 = vmand %vm227, %vm229
      %vm232 = vmand %vm228, %vm230
      %v233 = vsel %vm231, %v184, 0.0
      %v234 = vsel %vm232, %v185, 0.0
      %vm235 = vcmask 130048
      %v236 = vsel %vm235, %v233, -inf
      %237 = vmax.xlane.f32.xlu0 %v236
      %v238 = vpop.xlane.xlu0 %237
      %v239 = vsel %vm235, %v234, -inf
      %240 = vmax.xlane.f32.xlu0 %v239
      %v241 = vpop.xlane.xlu0 %240
      %v242 = vsel %vm227, 1e+30, %v184
      %v243 = vsel %vm228, 1e+30, %v185
      %v244 = vsel %vm235, %v242, inf
      %245 = vmin.xlane.f32.xlu0 %v244
      %v246 = vpop.xlane.xlu0 %245
      %v247 = vsel %vm235, %v243, inf
      %248 = vmin.xlane.f32.xlu0 %v247
      %v249 = vpop.xlane.xlu0 %248
      %v250 = vrsqrt.pop %v238
      %v251 = vmul.f32 %v250, %v238
      %v252 = vmul.f32 %v251, %v250
      %v253 = vmul.f32 0.5, %v252
      %v254 = vsub.f32 1.5, %v253
      %v255 = vmul.f32 %v250, %v254
      %v256 = vmul.f32 %v238, %v255
      %vm257 = vcmp.eq.f32.partialorder %v238, inf
      %v258 = vsel %vm257, %v238, %v256
      %vm259 = vcmp.eq.f32.partialorder %v238, 0.0
      %v260 = vand.u32 %v238, 2147483648
      %v261 = vsel %vm259, %v260, %v258
      %v262 = vrsqrt.pop %v241
      %v263 = vmul.f32 %v262, %v241
      %v264 = vmul.f32 %v263, %v262
      %v265 = vmul.f32 0.5, %v264
      %v266 = vsub.f32 1.5, %v265
      %v267 = vmul.f32 %v262, %v266
      %v268 = vmul.f32 %v241, %v267
      %vm269 = vcmp.eq.f32.partialorder %v241, inf
      %v270 = vsel %vm269, %v241, %v268
      %vm271 = vcmp.eq.f32.partialorder %v241, 0.0
      %v272 = vand.u32 %v241, 2147483648
      %v273 = vsel %vm271, %v272, %v270
      %v274 = vrsqrt.pop %v246
      %v275 = vmul.f32 %v274, %v246
      %v276 = vmul.f32 %v275, %v274
      %v277 = vmul.f32 0.5, %v276
      %v278 = vsub.f32 1.5, %v277
      %v279 = vmul.f32 %v274, %v278
      %v280 = vmul.f32 %v246, %v279
      %vm281 = vcmp.eq.f32.partialorder %v246, inf
      %v282 = vsel %vm281, %v246, %v280
      %vm283 = vcmp.eq.f32.partialorder %v246, 0.0
      %v284 = vand.u32 %v246, 2147483648
      %v285 = vsel %vm283, %v284, %v282
      %v286 = vrsqrt.pop %v249
      %v287 = vmul.f32 %v286, %v249
      %v288 = vmul.f32 %v287, %v286
      %v289 = vmul.f32 0.5, %v288
      %v290 = vsub.f32 1.5, %v289
      %v291 = vmul.f32 %v286, %v290
      %v292 = vmul.f32 %v249, %v291
      %vm293 = vcmp.eq.f32.partialorder %v249, inf
      %v294 = vsel %vm293, %v249, %v292
      %vm295 = vcmp.eq.f32.partialorder %v249, 0.0
      %v296 = vand.u32 %v249, 2147483648
      %v297 = vsel %vm295, %v296, %v294
      %v298 = vsub.f32 %v261, %v285
      %v299 = vsub.f32 %v273, %v297
      %v300 = vadd.f32 %v298, 0.3
      %v301 = vadd.f32 %v299, 0.3
      %v302 = vmax.f32 %v300, 0.0
      %v303 = vmax.f32 %v301, 0.0
      %vm304 = vcmask 7168
      %v305 = vsel %vm304, %v302, 0.0
      %v306 = vsel %vm304, %v303, 0.0
      %v307 = vadd.f32 %v305, %v306
      %308 = vadd.xlane.f32.xlu0 %v307
      %v309 = vpop.xlane.xlu0 %308
      %v310 = vrot.slane %v309, 4
      %v311 = vadd.f32 %v309, %v310
      %v312 = vrot.slane %v311, 2
      %v313 = vadd.f32 %v311, %v312
      %v314 = vrot.slane %v313, 1
      %v315 = vadd.f32 %v313, %v314
      %s316 = vtos %v315
      %v317 = vrcp.pop 16.0
      %v318 = vmul.f32 16.0, %v317
      %v319 = vsub.f32 1.0, %v318
      %v320 = vmul.f32 %v317, %v319
      %v321 = vadd.f32 %v317, %v320
      %vm322 = vweird.f32 %v317
      %v323 = vsel %vm322, %v317, %v321
      %s324 = vtos %v323
      %s325 = smul.f32 %s316, %s324
      %v326 = vstv %s325
      %327 = vst [vmem:[%s114] sm:$0xff] %v326
      %p328 = scmp.lt.s32.totalorder %s12, 1
      %s329 = scalar_select %p328, %s12, 1
      %s330 = smul.addr %s329, 8
      %s331 = scalar_lea.vmem %s1, %s330
      // Predicated region
      $region25: #{_total_loss.4} parent=23 // pred_check
        %p332 = pneg %p56
      $region26: #{_total_loss.4} parent=23 // pred_check_branch
        %334 = sbr.rel (%p332) target = $region28
      $region27: #{_total_loss.4} parent=23 // pred_region
        _
      $region28: #{_total_loss.4} parent=23 // pred_fallthru
        _
    $region24: #{_total_loss.4} parent=5 // pred_fallthru
      _
    %p335 = scmp.le.s32.totalorder 2, %s7
    // Predicated region
    $region29: #{_total_loss.4} parent=5 // pred_check
      %p336 = pneg %p335
    $region30: #{_total_loss.4} parent=5 // pred_check_branch
      %338 = sbr.rel (%p336) target = $region32
    $region31: #{_total_loss.4} parent=5 // pred_region
      %s339 = ssub.s32 %s7, 2
      // Predicated region
      $region33: #{_total_loss.4} parent=31 // pred_check
        %p340 = pneg %p62
      $region34: #{_total_loss.4} parent=31 // pred_check_branch
        %342 = sbr.rel (%p340) target = $region36
      $region35: #{_total_loss.4} parent=31 // pred_region
        %p343 = scmp.lt.s32.totalorder %s13, 1
        %s344 = scalar_select %p343, %s13, 1
        %s345 = smul.addr %s344, 8
        %s346 = scalar_lea.vmem %s1, %s345
      $region36: #{_total_loss.4} parent=31 // pred_fallthru
        _
    $region32: #{_total_loss.4} parent=5 // pred_fallthru
      _
  $region6: #{_total_loss.4} parent=0 // loop_footer
    %s11 = sadd.s32 1, %s7
  $region7: #{_total_loss.4} parent=0 // loop_footer_branch
    %6 = sbr.rel target = $region3
  $region8: #{_total_loss.4} parent=0 // loop_exit
    _

// kernel: _total_loss.5
$region0: #{_total_loss.5}
  #allocation0 [shape = 'u32[]', space=smem, size = 0x4, offset = 0x4, fixed_abs, tag = 'smem constant byte address 0x4 - core index']
  #allocation1 [shape = 'u32[72,128]{1,0:T(1,128)}', space=vmem, size = 0x9000, scoped, tag = 'internal scratch']
  %s0 = inlined_call_operand.vmem [shape: f32[2,16,8], index: 0, kind: input, shape index: {}]
  %s1 = inlined_call_operand.vmem [shape: f32[2,8,128], index: 1, kind: output, shape index: {}]
  %s2 = sld [smem:[#allocation0]]
  $region37: #{_total_loss.5} parent=0
    _
  %s4 = ssub.s32 1, %s2
  %s5 = scalar_select 0, %s4, %s2
  loop: start=0, step=1, limit=4
  $region2: #{_total_loss.5} parent=0 // loop_pre_header
    _
  $region3: #{_total_loss.5} parent=0 // loop_header
    %s7 = sphi 0, %s11
    %p8 = scmp.ge.s32.totalorder %s7, 4
    %s17 = sphi 0, %s19
    %s20 = sphi 0, %s17
    %s21 = sphi 0, %s20
    %s37 = sphi 0, %s21
    %s43 = sphi 0, %s45
    %s46 = sphi 0, %s43
    %s47 = sphi 0, %s46
    %s63 = sphi 0, %s47
  $region4: #{_total_loss.5} parent=0 // loop_header_branch
    %10 = sbr.rel (%p8) target = $region8
  $region5: #{_total_loss.5} parent=0 // loop_body
    %s12 = ssub.s32 %s7, 1
    %s13 = ssub.s32 %s7, 2
    %s14 = sadd.s32 %s7, 1
    %s15 = ssub.s32 %s7, %s14
    %p16 = scmp.eq.s32.totalorder %s15, 0
    %s18 = sadd.s32 %s17, 1
    %s19 = scalar_select %p16, %s17, %s18
    %p22 = pneg %p16
    %p23 = scmp.eq.s32.totalorder %s7, 1
    %p24 = por %p22, %p23
    %p25 = scmp.ne.s32.totalorder %s17, %s20
    %p26 = scmp.eq.s32.totalorder %s7, 0
    %p27 = por %p25, %p26
    %p28 = scmp.ne.s32.totalorder %s17, %s20
    %p29 = scmp.eq.s32.totalorder %s12, 1
    %p30 = por %p28, %p29
    %p31 = scmp.ne.s32.totalorder %s20, %s21
    %p32 = scmp.eq.s32.totalorder %s12, 0
    %p33 = por %p31, %p32
    %p34 = scmp.ne.s32.totalorder %s20, %s21
    %p35 = scmp.eq.s32.totalorder %s13, 1
    %p36 = por %p34, %p35
    %p38 = scmp.ne.s32.totalorder %s21, %s37
    %p39 = scmp.eq.s32.totalorder %s13, 0
    %p40 = por %p38, %p39
    %s41 = ssub.s32 %s7, %s14
    %p42 = scmp.eq.s32.totalorder %s41, 0
    %s44 = sadd.s32 %s43, 1
    %s45 = scalar_select %p42, %s43, %s44
    %p48 = pneg %p42
    %p49 = scmp.eq.s32.totalorder %s7, 1
    %p50 = por %p48, %p49
    %p51 = scmp.ne.s32.totalorder %s43, %s46
    %p52 = scmp.eq.s32.totalorder %s7, 0
    %p53 = por %p51, %p52
    %p54 = scmp.ne.s32.totalorder %s43, %s46
    %p55 = scmp.eq.s32.totalorder %s12, 1
    %p56 = por %p54, %p55
    %p57 = scmp.ne.s32.totalorder %s46, %s47
    %p58 = scmp.eq.s32.totalorder %s12, 0
    %p59 = por %p57, %p58
    %p60 = scmp.ne.s32.totalorder %s46, %s47
    %p61 = scmp.eq.s32.totalorder %s13, 1
    %p62 = por %p60, %p61
    %p64 = scmp.ne.s32.totalorder %s47, %s63
    %p65 = scmp.eq.s32.totalorder %s13, 0
    %p66 = por %p64, %p65
    %p67 = scmp.le.s32.totalorder 1, %s7
    %p68 = scmp.lt.s32.totalorder %s7, 3
    %p69 = pnand %p67, %p68
    %p70 = pneg %p69
    // Predicated region
    $region9: #{_total_loss.5} parent=5 // pred_check
      _
    $region10: #{_total_loss.5} parent=5 // pred_check_branch
      %72 = sbr.rel (%p69) target = $region12
    $region11: #{_total_loss.5} parent=5 // pred_region
      %s73 = ssub.s32 %s7, 1
    $region12: #{_total_loss.5} parent=5 // pred_fallthru
      _
    %p74 = scmp.lt.s32.totalorder %s7, 2
    // Predicated region
    $region13: #{_total_loss.5} parent=5 // pred_check
      %p75 = pneg %p74
    $region14: #{_total_loss.5} parent=5 // pred_check_branch
      %77 = sbr.rel (%p75) target = $region16
    $region15: #{_total_loss.5} parent=5 // pred_region
      // Predicated region
      $region17: #{_total_loss.5} parent=15 // pred_check
        %p78 = pneg %p27
      $region18: #{_total_loss.5} parent=15 // pred_check_branch
        %80 = sbr.rel (%p78) target = $region20
      $region19: #{_total_loss.5} parent=15 // pred_region
        %p81 = scmp.lt.s32.totalorder %s7, 1
        %s82 = scalar_select %p81, %s7, 1
        %s83 = smul.addr %s82, 2
        %s84 = smul.addr %s83, 8
        %s85 = scalar_lea.vmem %s0, %s84
      $region20: #{_total_loss.5} parent=15 // pred_fallthru
        _
    $region16: #{_total_loss.5} parent=5 // pred_fallthru
      _
    %p86 = scmp.le.s32.totalorder 1, %s7
    %p87 = scmp.lt.s32.totalorder %s7, 3
    %p88 = pnand %p86, %p87
    %p89 = pneg %p88
    // Predicated region
    $region21: #{_total_loss.5} parent=5 // pred_check
      _
    $region22: #{_total_loss.5} parent=5 // pred_check_branch
      %91 = sbr.rel (%p88) target = $region24
    $region23: #{_total_loss.5} parent=5 // pred_region
      %s92 = ssub.s32 %s7, 1
      %p93 = scmp.lt.s32.totalorder %s12, 1
      %s94 = scalar_select %p93, %s12, 1
      %s95 = smul.addr %s94, 2
      %s96 = smul.addr %s95, 8
      %s97 = scalar_lea.vmem %s0, %s96
      %p98 = pneg %p33
      %p99 = pneg %p30
      %p100 = pneg %p59
      %p101 = pneg %p56
      %p102 = scmp.lt.s32.totalorder %s12, 1
      %s103 = scalar_select %p102, %s12, 1
      %s104 = smul.addr %s103, 8
      %s105 = scalar_lea.vmem %s1, %s104
      %p106 = scmp.lt.s32.totalorder %s12, 1
      %s107 = scalar_select %p106, %s12, 1
      %s108 = smul.addr %s107, 2
      %s109 = smul.addr %s108, 8
      %s110 = scalar_lea.vmem %s0, %s109
      %p111 = scmp.lt.s32.totalorder %s12, 1
      %s112 = scalar_select %p111, %s12, 1
      %s113 = smul.addr %s112, 8
      %s114 = scalar_lea.vmem %s1, %s113
      %v115 = vld [vmem:[%s110] sm:$0xff]
      %v116 = vld [vmem:[%s110 + $0x8] sm:$0xff]
      %vm117 = vcmask 64512
      %v118 = vsel %vm117, %v115, -inf
      %119 = vmax.xlane.f32.xlu0 %v118
      %v120 = vpop.xlane.xlu0 %119
      %v121 = vsel %vm117, %v116, -inf
      %122 = vmax.xlane.f32.xlu0 %v121
      %v123 = vpop.xlane.xlu0 %122
      %v124 = vsub.f32 %v115, %v120
      %v125 = vsub.f32 %v116, %v123
      %v126 = vmul.f32 %v124, 1.442695
      %v127 = vpow.pop %v126
      %v128 = vmul.f32 %v125, 1.442695
      %v129 = vpow.pop %v128
      %v130 = vsel %vm117, %v127, 0.0
      %131 = vadd.xlane.f32.xlu0 %v130
      %v132 = vpop.xlane.xlu0 %131
      %v133 = vsel %vm117, %v129, 0.0
      %134 = vadd.xlane.f32.xlu0 %v133
      %v135 = vpop.xlane.xlu0 %134
      %v136 = vlog2.pop %v132
      %v137 = vmul.f32 %v136, 0.6931472
      %v138 = vlog2.pop %v135
      %v139 = vmul.f32 %v138, 0.6931472
      %v140 = vadd.f32 %v137, %v120
      %v141 = vadd.f32 %v139, %v123
      %v142 = vsub.f32 %v115, %v140
      %v143 = vsub.f32 %v116, %v141
      %v144 = vlaneseq
      %v145 = vshrl.u32 %v144, 7
      %v146 = vadd.s32 %v145, 8
      %v147 = vlaneseq
      %v148 = vand.u32 %v147, 127
      %vm149 = vcmp.lt.s32.totalorder %v145, 0
      %v150 = vsub.s32 0, %v145
      %v151 = vsel %vm149, %v150, %v145
      %v152 = vshrl.u32 %v151, 3
      %v153 = vand.u32 %v151, 7
      %v154 = vsub.s32 0, %v153
      %v155 = vsel %vm149, %v154, %v153
      %vm156 = vcmp.lt.s32.totalorder %v146, 0
      %v157 = vsub.s32 0, %v146
      %v158 = vsel %vm156, %v157, %v146
      %v159 = vshrl.u32 %v158, 3
      %v160 = vand.u32 %v158, 7
      %v161 = vsub.s32 0, %v160
      %v162 = vsel %vm156, %v161, %v160
      %vm163 = vcmp.ne.s32.totalorder %v155, 0
      %vm164 = vcmp.ne.s32.totalorder %v162, 0
      %vm165 = vcmp.lt.s32.totalorder %v155, 0
      %vm166 = vcmp.lt.s32.totalorder %v162, 0
      %vm167 = vmand %vm165, %vm163
      %vm168 = vmand %vm166, %vm164
      %v169 = vadd.s32 %v155, 8
      %v170 = vadd.s32 %v162, 8
      %v171 = vsel %vm167, %v169, %v155
      %v172 = vsel %vm168, %v170, %v162
      %vm173 = vcmp.eq.s32.totalorder %v148, %v171
      %vm174 = vcmp.eq.s32.totalorder %v148, %v172
      %v175 = vsel %vm173, %v142, 0.0
      %v176 = vsel %vm174, %v143, 0.0
      %v177 = vsel %vm117, %v175, 0.0
      %178 = vadd.xlane.f32.xlu0 %v177
      %v179 = vpop.xlane.xlu0 %178
      %v180 = vsel %vm117, %v176, 0.0
      %181 = vadd.xlane.f32.xlu0 %v180
      %v182 = vpop.xlane.xlu0 %181
      %v183 = vsub.f32 0.0, %v179
      %v184 = vsub.f32 0.0, %v182
      %v185 = vsel %vm117, %v142, 0.0
      %186 = vadd.xlane.f32.xlu0 %v185
      %v187 = vpop.xlane.xlu0 %186
      %v188 = vsel %vm117, %v143, 0.0
      %189 = vadd.xlane.f32.xlu0 %v188
      %v190 = vpop.xlane.xlu0 %189
      %v191 = vrcp.pop 8.0
      %v192 = vmul.f32 8.0, %v191
      %v193 = vsub.f32 1.0, %v192
      %v194 = vmul.f32 %v191, %v193
      %v195 = vadd.f32 %v191, %v194
      %vm196 = vweird.f32 %v191
      %v197 = vsel %vm196, %v191, %v195
      %v198 = vmul.f32 %v187, %v197
      %v199 = vmul.f32 %v190, %v197
      %v200 = vsub.f32 0.0, %v198
      %v201 = vsub.f32 0.0, %v199
      %v202 = vmul.f32 %v183, 0.9
      %v203 = vmul.f32 %v184, 0.9
      %v204 = vmul.f32 %v200, 0.1
      %v205 = vmul.f32 %v201, 0.1
      %v206 = vadd.f32 %v202, %v204
      %v207 = vadd.f32 %v203, %v205
      %vm208 = vcmask 7168
      %v209 = vsel %vm208, %v206, 0.0
      %v210 = vsel %vm208, %v207, 0.0
      %v211 = vadd.f32 %v209, %v210
      %212 = vadd.xlane.f32.xlu0 %v211
      %v213 = vpop.xlane.xlu0 %212
      %v214 = vrot.slane %v213, 4
      %v215 = vadd.f32 %v213, %v214
      %v216 = vrot.slane %v215, 2
      %v217 = vadd.f32 %v215, %v216
      %v218 = vrot.slane %v217, 1
      %v219 = vadd.f32 %v217, %v218
      %s220 = vtos %v219
      %v221 = vrcp.pop 16.0
      %v222 = vmul.f32 16.0, %v221
      %v223 = vsub.f32 1.0, %v222
      %v224 = vmul.f32 %v221, %v223
      %v225 = vadd.f32 %v221, %v224
      %vm226 = vweird.f32 %v221
      %v227 = vsel %vm226, %v221, %v225
      %s228 = vtos %v227
      %s229 = smul.f32 %s220, %s228
      %v230 = vstv %s229
      %231 = vst [vmem:[%s114] sm:$0xff] %v230
      %p232 = scmp.lt.s32.totalorder %s12, 1
      %s233 = scalar_select %p232, %s12, 1
      %s234 = smul.addr %s233, 8
      %s235 = scalar_lea.vmem %s1, %s234
      // Predicated region
      $region25: #{_total_loss.5} parent=23 // pred_check
        %p236 = pneg %p56
      $region26: #{_total_loss.5} parent=23 // pred_check_branch
        %238 = sbr.rel (%p236) target = $region28
      $region27: #{_total_loss.5} parent=23 // pred_region
        _
      $region28: #{_total_loss.5} parent=23 // pred_fallthru
        _
    $region24: #{_total_loss.5} parent=5 // pred_fallthru
      _
    %p239 = scmp.le.s32.totalorder 2, %s7
    // Predicated region
    $region29: #{_total_loss.5} parent=5 // pred_check
      %p240 = pneg %p239
    $region30: #{_total_loss.5} parent=5 // pred_check_branch
      %242 = sbr.rel (%p240) target = $region32
    $region31: #{_total_loss.5} parent=5 // pred_region
      %s243 = ssub.s32 %s7, 2
      // Predicated region
      $region33: #{_total_loss.5} parent=31 // pred_check
        %p244 = pneg %p62
      $region34: #{_total_loss.5} parent=31 // pred_check_branch
        %246 = sbr.rel (%p244) target = $region36
      $region35: #{_total_loss.5} parent=31 // pred_region
        %p247 = scmp.lt.s32.totalorder %s13, 1
        %s248 = scalar_select %p247, %s13, 1
        %s249 = smul.addr %s248, 8
        %s250 = scalar_lea.vmem %s1, %s249
      $region36: #{_total_loss.5} parent=31 // pred_fallthru
        _
    $region32: #{_total_loss.5} parent=5 // pred_fallthru
      _
  $region6: #{_total_loss.5} parent=0 // loop_footer
    %s11 = sadd.s32 1, %s7
  $region7: #{_total_loss.5} parent=0 // loop_footer_branch
    %6 = sbr.rel target = $region3
  $region8: #{_total_loss.5} parent=0 // loop_exit
    _

</llo_original>
